<compile_context>
chip_gen: v7x
topology: tpu7x:2x2x1
jax: 0.10.0
libtpu: 0.0.40
codegen_flags: <defaults>
</compile_context>

<pallas_src>
import functools

import numpy as np
import jax
import jax.numpy as jnp
from jax.experimental import pallas as pl
from jax.experimental.pallas import tpu as pltpu


def _perm_matrix(W):
    """(8W, 8W) 0/1 matrix: dst lane hb*2W + wb*W + w <- src lane 8*w + 4*wb + hb."""
    P = np.zeros((8 * W, 8 * W), dtype=np.float32)
    for hb in range(4):
        for wb in range(2):
            for w in range(W):
                P[8 * w + 4 * wb + hb, hb * 2 * W + wb * W + w] = 1.0
    return P


def _pick_batch_tile(B, H, W, C, itemsize):
    """Largest batch fold that keeps blocks a few MiB (v7x VMEM), >=2 grid steps
    when B >= 2 (v7x has 2 TensorCores), bounded trace-time unrolling, and B % Bt == 0."""
    per_batch_out = C * 8 * H * W * itemsize
    cap = max(1, (2 * 1024 * 1024) // per_batch_out)   # ~2 MiB output block
    cap = min(cap, max(1, 256 // max(1, H)))            # bound the 4*H*Bt unrolled slices
    if B >= 2:
        cap = min(cap, B // 2)                          # keep >=2 grid steps
    cap = max(1, min(cap, B))
    for bt in range(int(cap), 0, -1):
        if B % bt == 0:
            return bt
    return 1


def _reshape_input_kernel(x_ref, p_ref, o_ref, *, Bt, H, W, C):
    # x_ref: (Bt*H, 8W)   rows = (batch, h), lanes = 8*w + f       (lane-dense)
    # p_ref: (8W, 8W)     constant de-interleave permutation
    # o_ref: (Bt, C, 8HW) flat NCHW rows (row-major (4H, 2W) per (b, c))
    x = x_ref[...].astype(jnp.float32)
    p = p_ref[...]
    # Lane de-interleave on the MXU: y[r, hb*2W + wb*W + w] = x[r, 8*w + 4*wb + hb].
    # Exact: each result element is 1.0 * x_src plus exact zeros (HIGHEST precision).
    y = jnp.dot(x, p, precision=jax.lax.Precision.HIGHEST,
                preferred_element_type=jnp.float32).astype(o_ref.dtype)

    two_w = 2 * W
    n_lanes = 8 * H * W
    for b in range(Bt):
        # Row-major flatten of batch b's (4H, 2W) slab: output row hb*H + h is the
        # contiguous lane window [hb*2W, (hb+1)*2W) of y row b*H + h.  Built from
        # static contiguous slices + one lane concat (the mandatory relayout for a
        # lane-dense output when 2W < 128); cost hides under the store DMA.
        rows = [y[b * H + h: b * H + h + 1, hb * two_w:(hb + 1) * two_w]
                for hb in range(4) for h in range(H)]
        flat = jnp.concatenate(rows, axis=1)            # (1, 8*H*W)
        # Channel replication to match the module's output exactly.
        # TODO(synk): if the consumer can broadcast along C, emit C=1 here and save
        # 2/3 of the HBM write traffic (writes dominate this bandwidth-bound op).
        o_ref[b, :, :] = jnp.broadcast_to(flat, (C, n_lanes))


def reshape_input(x, cfg):
    """Pallas implementation of ReshapeInput.forward.

    x: [B, H, W, 8]  ->  [B, C, 4H, 2W]  where C = 1 or 3 from cfg['channels'].
    """
    B, H, W, F = x.shape
    assert F == 8, "ReshapeInput expects 8 feature slices along the last dim"
    C = 1 if cfg["channels"] == 1 else 3
    dtype = x.dtype
    itemsize = np.dtype(dtype).itemsize
    n_lanes = 8 * H * W

    Bt = _pick_batch_tile(B, H, W, C, itemsize)
    if (Bt * H) % 8 != 0:
        Bt = B                      # single full block keeps the sublane dim legal
    grid = (B // Bt,)

    x2 = x.reshape(B * H, 8 * W)                       # free, contiguous
    perm = jnp.asarray(_perm_matrix(W))                # (8W, 8W) f32, VMEM-resident

    in_bytes = B * H * W * 8 * itemsize + perm.size * 4
    out_bytes = B * C * n_lanes * itemsize

    kernel = functools.partial(_reshape_input_kernel, Bt=Bt, H=H, W=W, C=C)

    out_flat = pl.pallas_call(
        kernel,
        out_shape=jax.ShapeDtypeStruct((B, C, n_lanes), dtype),
        grid=grid,
        in_specs=[
            pl.BlockSpec((Bt * H, 8 * W), lambda i: (i, 0)),
            pl.BlockSpec((8 * W, 8 * W), lambda i: (0, 0)),   # constant -> loaded once
        ],
        out_specs=pl.BlockSpec((Bt, C, n_lanes), lambda i: (i, 0, 0)),
        compiler_params=pltpu.CompilerParams(dimension_semantics=("parallel",)),
        cost_estimate=pl.CostEstimate(
            flops=2 * B * H * (8 * W) * (8 * W),
            transcendentals=0,
            bytes_accessed=in_bytes + out_bytes,
        ),
    )(x2, perm)

    return out_flat.reshape(B, C, 4 * H, 2 * W)        # free, contiguous


def reshape_input_ref(x, cfg):
    """Pure-jnp reference mirroring the torch code, for validation."""
    channels = [x[:, :, :, i:i + 1] for i in range(8)]
    x1 = jnp.concatenate(channels[:4], axis=1)
    x2 = jnp.concatenate(channels[4:], axis=1)
    x3 = jnp.concatenate([x1, x2], axis=2)
    xo = jnp.concatenate([x3] if cfg["channels"] == 1 else [x3, x3, x3], axis=3)
    return jnp.transpose(xo, (0, 3, 1, 2))


if __name__ == "__main__":
    cfg = {"channels": 3}   # module has no learnable parameters
    key = jax.random.PRNGKey(0)
    x = jax.random.normal(key, (2, 16, 16, 8), dtype=jnp.float32)

    out = jax.block_until_ready(reshape_input(x, cfg))
    ref = reshape_input_ref(x, cfg)

    assert out.shape == (2, 3, 64, 32), out.shape
    assert out.dtype == ref.dtype
    assert jnp.allclose(out, ref), "Pallas output mismatch vs reference"
    print("KERNEL_OK")
</pallas_src>

<mosaic_0001>
module attributes {stable_mosaic.version = 11 : i64} {
  func.func @_reshape_input_kernel(%arg0: i32, %arg1: memref<16x128xf32, #tpu.memory_space<vmem>>, %arg2: memref<128x128xf32, #tpu.memory_space<vmem>>, %arg3: memref<1x3x2048xf32, #tpu.memory_space<vmem>>) attributes {dimension_semantics = [#tpu.dimension_semantics<parallel>], iteration_bounds = array<i64: 2>, scalar_prefetch = 0 : i64, scratch_operands = 0 : i64, tpu.core_type = #tpu.core_type<tc>, window_params = [{transform_indices = @transform_0, window_bounds = array<i64: 16, 128>}, {pipeline_mode = #tpu.pipeline_mode<synchronous>, transform_indices = @transform_1, window_bounds = array<i64: 128, 128>}, {transform_indices = @transform_2, window_bounds = array<i64: 1, 3, 2048>}]} {
    %c0 = arith.constant 0 : index
    %c0_0 = arith.constant 0 : index
    %0 = vector.load %arg1[%c0, %c0_0] : memref<16x128xf32, #tpu.memory_space<vmem>>, vector<16x128xf32>
    %c0_1 = arith.constant 0 : index
    %c0_2 = arith.constant 0 : index
    %1 = vector.load %arg2[%c0_1, %c0_2] : memref<128x128xf32, #tpu.memory_space<vmem>>, vector<128x128xf32>
    %cst = arith.constant dense<0.000000e+00> : vector<16x128xf32>
    %2 = tpu.matmul %0, %1, %cst {dimension_numbers = #tpu.dot_dimension_numbers<[1], [0], [0], [1], [0, 0, 1, 1], [], []>, precision = #tpu.contract_precision<fp32>} : vector<16x128xf32>, vector<128x128xf32>, vector<16x128xf32> -> vector<16x128xf32>
    %3 = vector.extract_strided_slice %2 {offsets = [0, 0], sizes = [1, 32], strides = [1, 1]} : vector<16x128xf32> to vector<1x32xf32>
    %4 = vector.extract_strided_slice %2 {offsets = [1, 0], sizes = [1, 32], strides = [1, 1]} : vector<16x128xf32> to vector<1x32xf32>
    %5 = vector.extract_strided_slice %2 {offsets = [2, 0], sizes = [1, 32], strides = [1, 1]} : vector<16x128xf32> to vector<1x32xf32>
    %6 = vector.extract_strided_slice %2 {offsets = [3, 0], sizes = [1, 32], strides = [1, 1]} : vector<16x128xf32> to vector<1x32xf32>
    %7 = vector.extract_strided_slice %2 {offsets = [4, 0], sizes = [1, 32], strides = [1, 1]} : vector<16x128xf32> to vector<1x32xf32>
    %8 = vector.extract_strided_slice %2 {offsets = [5, 0], sizes = [1, 32], strides = [1, 1]} : vector<16x128xf32> to vector<1x32xf32>
    %9 = vector.extract_strided_slice %2 {offsets = [6, 0], sizes = [1, 32], strides = [1, 1]} : vector<16x128xf32> to vector<1x32xf32>
    %10 = vector.extract_strided_slice %2 {offsets = [7, 0], sizes = [1, 32], strides = [1, 1]} : vector<16x128xf32> to vector<1x32xf32>
    %11 = vector.extract_strided_slice %2 {offsets = [8, 0], sizes = [1, 32], strides = [1, 1]} : vector<16x128xf32> to vector<1x32xf32>
    %12 = vector.extract_strided_slice %2 {offsets = [9, 0], sizes = [1, 32], strides = [1, 1]} : vector<16x128xf32> to vector<1x32xf32>
    %13 = vector.extract_strided_slice %2 {offsets = [10, 0], sizes = [1, 32], strides = [1, 1]} : vector<16x128xf32> to vector<1x32xf32>
    %14 = vector.extract_strided_slice %2 {offsets = [11, 0], sizes = [1, 32], strides = [1, 1]} : vector<16x128xf32> to vector<1x32xf32>
    %15 = vector.extract_strided_slice %2 {offsets = [12, 0], sizes = [1, 32], strides = [1, 1]} : vector<16x128xf32> to vector<1x32xf32>
    %16 = vector.extract_strided_slice %2 {offsets = [13, 0], sizes = [1, 32], strides = [1, 1]} : vector<16x128xf32> to vector<1x32xf32>
    %17 = vector.extract_strided_slice %2 {offsets = [14, 0], sizes = [1, 32], strides = [1, 1]} : vector<16x128xf32> to vector<1x32xf32>
    %18 = vector.extract_strided_slice %2 {offsets = [15, 0], sizes = [1, 32], strides = [1, 1]} : vector<16x128xf32> to vector<1x32xf32>
    %19 = vector.extract_strided_slice %2 {offsets = [0, 32], sizes = [1, 32], strides = [1, 1]} : vector<16x128xf32> to vector<1x32xf32>
    %20 = vector.extract_strided_slice %2 {offsets = [1, 32], sizes = [1, 32], strides = [1, 1]} : vector<16x128xf32> to vector<1x32xf32>
    %21 = vector.extract_strided_slice %2 {offsets = [2, 32], sizes = [1, 32], strides = [1, 1]} : vector<16x128xf32> to vector<1x32xf32>
    %22 = vector.extract_strided_slice %2 {offsets = [3, 32], sizes = [1, 32], strides = [1, 1]} : vector<16x128xf32> to vector<1x32xf32>
    %23 = vector.extract_strided_slice %2 {offsets = [4, 32], sizes = [1, 32], strides = [1, 1]} : vector<16x128xf32> to vector<1x32xf32>
    %24 = vector.extract_strided_slice %2 {offsets = [5, 32], sizes = [1, 32], strides = [1, 1]} : vector<16x128xf32> to vector<1x32xf32>
    %25 = vector.extract_strided_slice %2 {offsets = [6, 32], sizes = [1, 32], strides = [1, 1]} : vector<16x128xf32> to vector<1x32xf32>
    %26 = vector.extract_strided_slice %2 {offsets = [7, 32], sizes = [1, 32], strides = [1, 1]} : vector<16x128xf32> to vector<1x32xf32>
    %27 = vector.extract_strided_slice %2 {offsets = [8, 32], sizes = [1, 32], strides = [1, 1]} : vector<16x128xf32> to vector<1x32xf32>
    %28 = vector.extract_strided_slice %2 {offsets = [9, 32], sizes = [1, 32], strides = [1, 1]} : vector<16x128xf32> to vector<1x32xf32>
    %29 = vector.extract_strided_slice %2 {offsets = [10, 32], sizes = [1, 32], strides = [1, 1]} : vector<16x128xf32> to vector<1x32xf32>
    %30 = vector.extract_strided_slice %2 {offsets = [11, 32], sizes = [1, 32], strides = [1, 1]} : vector<16x128xf32> to vector<1x32xf32>
    %31 = vector.extract_strided_slice %2 {offsets = [12, 32], sizes = [1, 32], strides = [1, 1]} : vector<16x128xf32> to vector<1x32xf32>
    %32 = vector.extract_strided_slice %2 {offsets = [13, 32], sizes = [1, 32], strides = [1, 1]} : vector<16x128xf32> to vector<1x32xf32>
    %33 = vector.extract_strided_slice %2 {offsets = [14, 32], sizes = [1, 32], strides = [1, 1]} : vector<16x128xf32> to vector<1x32xf32>
    %34 = vector.extract_strided_slice %2 {offsets = [15, 32], sizes = [1, 32], strides = [1, 1]} : vector<16x128xf32> to vector<1x32xf32>
    %35 = vector.extract_strided_slice %2 {offsets = [0, 64], sizes = [1, 32], strides = [1, 1]} : vector<16x128xf32> to vector<1x32xf32>
    %36 = vector.extract_strided_slice %2 {offsets = [1, 64], sizes = [1, 32], strides = [1, 1]} : vector<16x128xf32> to vector<1x32xf32>
    %37 = vector.extract_strided_slice %2 {offsets = [2, 64], sizes = [1, 32], strides = [1, 1]} : vector<16x128xf32> to vector<1x32xf32>
    %38 = vector.extract_strided_slice %2 {offsets = [3, 64], sizes = [1, 32], strides = [1, 1]} : vector<16x128xf32> to vector<1x32xf32>
    %39 = vector.extract_strided_slice %2 {offsets = [4, 64], sizes = [1, 32], strides = [1, 1]} : vector<16x128xf32> to vector<1x32xf32>
    %40 = vector.extract_strided_slice %2 {offsets = [5, 64], sizes = [1, 32], strides = [1, 1]} : vector<16x128xf32> to vector<1x32xf32>
    %41 = vector.extract_strided_slice %2 {offsets = [6, 64], sizes = [1, 32], strides = [1, 1]} : vector<16x128xf32> to vector<1x32xf32>
    %42 = vector.extract_strided_slice %2 {offsets = [7, 64], sizes = [1, 32], strides = [1, 1]} : vector<16x128xf32> to vector<1x32xf32>
    %43 = vector.extract_strided_slice %2 {offsets = [8, 64], sizes = [1, 32], strides = [1, 1]} : vector<16x128xf32> to vector<1x32xf32>
    %44 = vector.extract_strided_slice %2 {offsets = [9, 64], sizes = [1, 32], strides = [1, 1]} : vector<16x128xf32> to vector<1x32xf32>
    %45 = vector.extract_strided_slice %2 {offsets = [10, 64], sizes = [1, 32], strides = [1, 1]} : vector<16x128xf32> to vector<1x32xf32>
    %46 = vector.extract_strided_slice %2 {offsets = [11, 64], sizes = [1, 32], strides = [1, 1]} : vector<16x128xf32> to vector<1x32xf32>
    %47 = vector.extract_strided_slice %2 {offsets = [12, 64], sizes = [1, 32], strides = [1, 1]} : vector<16x128xf32> to vector<1x32xf32>
    %48 = vector.extract_strided_slice %2 {offsets = [13, 64], sizes = [1, 32], strides = [1, 1]} : vector<16x128xf32> to vector<1x32xf32>
    %49 = vector.extract_strided_slice %2 {offsets = [14, 64], sizes = [1, 32], strides = [1, 1]} : vector<16x128xf32> to vector<1x32xf32>
    %50 = vector.extract_strided_slice %2 {offsets = [15, 64], sizes = [1, 32], strides = [1, 1]} : vector<16x128xf32> to vector<1x32xf32>
    %51 = vector.extract_strided_slice %2 {offsets = [0, 96], sizes = [1, 32], strides = [1, 1]} : vector<16x128xf32> to vector<1x32xf32>
    %52 = vector.extract_strided_slice %2 {offsets = [1, 96], sizes = [1, 32], strides = [1, 1]} : vector<16x128xf32> to vector<1x32xf32>
    %53 = vector.extract_strided_slice %2 {offsets = [2, 96], sizes = [1, 32], strides = [1, 1]} : vector<16x128xf32> to vector<1x32xf32>
    %54 = vector.extract_strided_slice %2 {offsets = [3, 96], sizes = [1, 32], strides = [1, 1]} : vector<16x128xf32> to vector<1x32xf32>
    %55 = vector.extract_strided_slice %2 {offsets = [4, 96], sizes = [1, 32], strides = [1, 1]} : vector<16x128xf32> to vector<1x32xf32>
    %56 = vector.extract_strided_slice %2 {offsets = [5, 96], sizes = [1, 32], strides = [1, 1]} : vector<16x128xf32> to vector<1x32xf32>
    %57 = vector.extract_strided_slice %2 {offsets = [6, 96], sizes = [1, 32], strides = [1, 1]} : vector<16x128xf32> to vector<1x32xf32>
    %58 = vector.extract_strided_slice %2 {offsets = [7, 96], sizes = [1, 32], strides = [1, 1]} : vector<16x128xf32> to vector<1x32xf32>
    %59 = vector.extract_strided_slice %2 {offsets = [8, 96], sizes = [1, 32], strides = [1, 1]} : vector<16x128xf32> to vector<1x32xf32>
    %60 = vector.extract_strided_slice %2 {offsets = [9, 96], sizes = [1, 32], strides = [1, 1]} : vector<16x128xf32> to vector<1x32xf32>
    %61 = vector.extract_strided_slice %2 {offsets = [10, 96], sizes = [1, 32], strides = [1, 1]} : vector<16x128xf32> to vector<1x32xf32>
    %62 = vector.extract_strided_slice %2 {offsets = [11, 96], sizes = [1, 32], strides = [1, 1]} : vector<16x128xf32> to vector<1x32xf32>
    %63 = vector.extract_strided_slice %2 {offsets = [12, 96], sizes = [1, 32], strides = [1, 1]} : vector<16x128xf32> to vector<1x32xf32>
    %64 = vector.extract_strided_slice %2 {offsets = [13, 96], sizes = [1, 32], strides = [1, 1]} : vector<16x128xf32> to vector<1x32xf32>
    %65 = vector.extract_strided_slice %2 {offsets = [14, 96], sizes = [1, 32], strides = [1, 1]} : vector<16x128xf32> to vector<1x32xf32>
    %66 = vector.extract_strided_slice %2 {offsets = [15, 96], sizes = [1, 32], strides = [1, 1]} : vector<16x128xf32> to vector<1x32xf32>
    %67 = tpu.concatenate %3, %4, %5, %6, %7, %8, %9, %10, %11, %12, %13, %14, %15, %16, %17, %18 in 1 : vector<1x32xf32>, vector<1x32xf32>, vector<1x32xf32>, vector<1x32xf32>, vector<1x32xf32>, vector<1x32xf32>, vector<1x32xf32>, vector<1x32xf32>, vector<1x32xf32>, vector<1x32xf32>, vector<1x32xf32>, vector<1x32xf32>, vector<1x32xf32>, vector<1x32xf32>, vector<1x32xf32>, vector<1x32xf32> -> vector<1x512xf32>
    %68 = tpu.concatenate %19, %20, %21, %22, %23, %24, %25, %26, %27, %28, %29, %30, %31, %32, %33, %34 in 1 : vector<1x32xf32>, vector<1x32xf32>, vector<1x32xf32>, vector<1x32xf32>, vector<1x32xf32>, vector<1x32xf32>, vector<1x32xf32>, vector<1x32xf32>, vector<1x32xf32>, vector<1x32xf32>, vector<1x32xf32>, vector<1x32xf32>, vector<1x32xf32>, vector<1x32xf32>, vector<1x32xf32>, vector<1x32xf32> -> vector<1x512xf32>
    %69 = tpu.concatenate %35, %36, %37, %38, %39, %40, %41, %42, %43, %44, %45, %46, %47, %48, %49, %50 in 1 : vector<1x32xf32>, vector<1x32xf32>, vector<1x32xf32>, vector<1x32xf32>, vector<1x32xf32>, vector<1x32xf32>, vector<1x32xf32>, vector<1x32xf32>, vector<1x32xf32>, vector<1x32xf32>, vector<1x32xf32>, vector<1x32xf32>, vector<1x32xf32>, vector<1x32xf32>, vector<1x32xf32>, vector<1x32xf32> -> vector<1x512xf32>
    %70 = tpu.concatenate %51, %52, %53, %54, %55, %56, %57, %58, %59, %60, %61, %62, %63, %64, %65, %66 in 1 : vector<1x32xf32>, vector<1x32xf32>, vector<1x32xf32>, vector<1x32xf32>, vector<1x32xf32>, vector<1x32xf32>, vector<1x32xf32>, vector<1x32xf32>, vector<1x32xf32>, vector<1x32xf32>, vector<1x32xf32>, vector<1x32xf32>, vector<1x32xf32>, vector<1x32xf32>, vector<1x32xf32>, vector<1x32xf32> -> vector<1x512xf32>
    %71 = tpu.concatenate %67, %68, %69, %70 in 1 : vector<1x512xf32>, vector<1x512xf32>, vector<1x512xf32>, vector<1x512xf32> -> vector<1x2048xf32>
    %72 = vector.shape_cast %71 : vector<1x2048xf32> to vector<1x2048xf32>
    %73 = vector.broadcast %72 : vector<1x2048xf32> to vector<3x2048xf32>
    %c0_3 = arith.constant 0 : index
    %c0_4 = arith.constant 0 : index
    %c0_5 = arith.constant 0 : index
    %74 = vector.load %arg3[%c0_3, %c0_4, %c0_5] : memref<1x3x2048xf32, #tpu.memory_space<vmem>>, vector<1x3x2048xf32>
    %75 = vector.shape_cast %74 : vector<1x3x2048xf32> to vector<3x2048xf32>
    %76 = vector.shape_cast %73 : vector<3x2048xf32> to vector<1x3x2048xf32>
    tpu.vector_store %arg3[%c0_3, %c0_4, %c0_5], %76 {strides = array<i32>} : memref<1x3x2048xf32, #tpu.memory_space<vmem>>, vector<1x3x2048xf32>,
    return
  }
  func.func @transform_0(%arg0: i32) -> (i32, i32) {
    %c0_i32 = arith.constant 0 : i32
    %c0_i32_0 = arith.constant 0 : i32
    return %arg0, %c0_i32 : i32, i32
  }
  func.func @transform_1(%arg0: i32) -> (i32, i32) {
    %c0_i32 = arith.constant 0 : i32
    %c0_i32_0 = arith.constant 0 : i32
    %c0_i32_1 = arith.constant 0 : i32
    return %c0_i32, %c0_i32_0 : i32, i32
  }
  func.func @transform_2(%arg0: i32) -> (i32, i32, i32) {
    %c0_i32 = arith.constant 0 : i32
    %c0_i32_0 = arith.constant 0 : i32
    %c0_i32_1 = arith.constant 0 : i32
    return %arg0, %c0_i32, %c0_i32_0 : i32, i32, i32
  }
}

</mosaic_0001>

<llo_original>
// kernel: tpu_custom_call.1
$region0: #{tpu_custom_call.1}
  #allocation0 [shape = 'u32[]', space=smem, size = 0x4, offset = 0x4, fixed_abs, tag = 'smem constant byte address 0x4 - core index']
  #allocation1 [shape = 'u32[144,128]{1,0:T(1,128)}', space=vmem, size = 0x12000, scoped, tag = 'internal scratch']
  %s0 = inlined_call_operand.hbm [shape: f32[32,128], index: 0, kind: input, shape index: {}]
  %s1 = inlined_call_operand.hbm [shape: f32[128,128], index: 1, kind: input, shape index: {}]
  %s2 = inlined_call_operand.vmem [shape: f32[2,3,2048], index: 2, kind: output, shape index: {}]
  %s3 = sld [smem:[#allocation0]]
  $region49: #{tpu_custom_call.1} parent=0
    _
  %s5 = ssub.s32 1, %s3
  %s6 = scalar_select 0, %s5, %s3
  $region1: #{tpu_custom_call.1} parent=0
    #allocation2 [shape = 'u8[16384]{0}', space=vmem, size = 0x4000, scoped, tag = 'input window, operand 0']
    #allocation3 [shape = 's32[2]{0}', space=sflag, size = 0x8, scoped, tag = 'scoped memory for tpu_custom_call.1']
    #allocation4 [shape = 'u8[65536]{0}', space=vmem, size = 0x10000, scoped, tag = 'input window, operand 1, single buffered']
    #allocation5 [shape = 's32[1]{0}', space=sflag, size = 0x4, scoped, tag = 'scoped memory for tpu_custom_call.1']
    %7 = vsyncpa [#allocation3], 0
    %s8 = scalar_lea.sflag [#allocation3], 1
    %9 = vsyncpa %s8, 0
    %10 = vsyncpa [#allocation5], 0
    loop: start=0, step=1, limit=4
    $region2: #{tpu_custom_call.1} parent=1 // loop_pre_header
      _
    $region3: #{tpu_custom_call.1} parent=1 // loop_header
      %s12 = sphi 0, %s16
      %p13 = scmp.ge.s32.totalorder %s12, 4
      %s22 = sphi 0, %s24
      %s25 = sphi 0, %s22
      %s26 = sphi 0, %s25
      %s42 = sphi 0, %s26
      %s46 = sphi 0, %s46
      %s48 = sphi 0, %s46
      %s49 = sphi 0, %s48
      %s63 = sphi 0, %s49
      %s69 = sphi 0, %s71
      %s72 = sphi 0, %s69
      %s73 = sphi 0, %s72
      %s89 = sphi 0, %s73
    $region4: #{tpu_custom_call.1} parent=1 // loop_header_branch
      %15 = sbr.rel (%p13) target = $region8
    $region5: #{tpu_custom_call.1} parent=1 // loop_body
      %s17 = ssub.s32 %s12, 1
      %s18 = ssub.s32 %s12, 2
      %s19 = sadd.s32 %s12, 1
      %s20 = ssub.s32 %s12, %s19
      %p21 = scmp.eq.s32.totalorder %s20, 0
      %s23 = sadd.s32 %s22, 1
      %s24 = scalar_select %p21, %s22, %s23
      %p27 = pneg %p21
      %p28 = scmp.eq.s32.totalorder %s12, 1
      %p29 = por %p27, %p28
      %p30 = scmp.ne.s32.totalorder %s22, %s25
      %p31 = scmp.eq.s32.totalorder %s12, 0
      %p32 = por %p30, %p31
      %p33 = scmp.ne.s32.totalorder %s22, %s25
      %p34 = scmp.eq.s32.totalorder %s17, 1
      %p35 = por %p33, %p34
      %p36 = scmp.ne.s32.totalorder %s25, %s26
      %p37 = scmp.eq.s32.totalorder %s17, 0
      %p38 = por %p36, %p37
      %p39 = scmp.ne.s32.totalorder %s25, %s26
      %p40 = scmp.eq.s32.totalorder %s18, 1
      %p41 = por %p39, %p40
      %p43 = scmp.ne.s32.totalorder %s26, %s42
      %p44 = scmp.eq.s32.totalorder %s18, 0
      %p45 = por %p43, %p44
      %s47 = sadd.s32 %s46, 1
      %p50 = scmp.eq.s32.totalorder %s12, 1
      %p51 = scmp.ne.s32.totalorder %s46, %s48
      %p52 = scmp.eq.s32.totalorder %s12, 0
      %p53 = por %p51, %p52
      %p54 = scmp.ne.s32.totalorder %s46, %s48
      %p55 = scmp.eq.s32.totalorder %s17, 1
      %p56 = por %p54, %p55
      %p57 = scmp.ne.s32.totalorder %s48, %s49
      %p58 = scmp.eq.s32.totalorder %s17, 0
      %p59 = por %p57, %p58
      %p60 = scmp.ne.s32.totalorder %s48, %s49
      %p61 = scmp.eq.s32.totalorder %s18, 1
      %p62 = por %p60, %p61
      %p64 = scmp.ne.s32.totalorder %s49, %s63
      %p65 = scmp.eq.s32.totalorder %s18, 0
      %p66 = por %p64, %p65
      %s67 = ssub.s32 %s12, %s19
      %p68 = scmp.eq.s32.totalorder %s67, 0
      %s70 = sadd.s32 %s69, 1
      %s71 = scalar_select %p68, %s69, %s70
      %p74 = pneg %p68
      %p75 = scmp.eq.s32.totalorder %s12, 1
      %p76 = por %p74, %p75
      %p77 = scmp.ne.s32.totalorder %s69, %s72
      %p78 = scmp.eq.s32.totalorder %s12, 0
      %p79 = por %p77, %p78
      %p80 = scmp.ne.s32.totalorder %s69, %s72
      %p81 = scmp.eq.s32.totalorder %s17, 1
      %p82 = por %p80, %p81
      %p83 = scmp.ne.s32.totalorder %s72, %s73
      %p84 = scmp.eq.s32.totalorder %s17, 0
      %p85 = por %p83, %p84
      %p86 = scmp.ne.s32.totalorder %s72, %s73
      %p87 = scmp.eq.s32.totalorder %s18, 1
      %p88 = por %p86, %p87
      %p90 = scmp.ne.s32.totalorder %s73, %s89
      %p91 = scmp.eq.s32.totalorder %s18, 0
      %p92 = por %p90, %p91
      %p93 = scmp.le.s32.totalorder 1, %s12
      %p94 = scmp.lt.s32.totalorder %s12, 3
      %p95 = pnand %p93, %p94
      %p96 = pneg %p95
      // Predicated region
      $region9: #{tpu_custom_call.1} parent=5 // pred_check
        _
      $region10: #{tpu_custom_call.1} parent=5 // pred_check_branch
        %98 = sbr.rel (%p95) target = $region12
      $region11: #{tpu_custom_call.1} parent=5 // pred_region
        %s99 = ssub.s32 %s12, 1
        // Predicated region
        $region13: #{tpu_custom_call.1} parent=11 // pred_check
          %p100 = pneg %p59
        $region14: #{tpu_custom_call.1} parent=11 // pred_check_branch
          %102 = sbr.rel (%p100) target = $region16
        $region15: #{tpu_custom_call.1} parent=11 // pred_region
          %s104 = ssub.s32 2048, 2048
          %105 = vsyncadd [#allocation5], %s104
          %s106 = sshll.u32 [#allocation4], 4
          %s107 = int_to_ptr.vmem [resolvable:$true] %s106
          %112 = dma.hbm_to_vmem [thread:$0]  %s1, 2048, %s107, [#allocation5], 128, 128, 8
        $region16: #{tpu_custom_call.1} parent=11 // pred_fallthru
          _
      $region12: #{tpu_custom_call.1} parent=5 // pred_fallthru
        _
      %p113 = scmp.lt.s32.totalorder %s12, 2
      // Predicated region
      $region17: #{tpu_custom_call.1} parent=5 // pred_check
        %p114 = pneg %p113
      $region18: #{tpu_custom_call.1} parent=5 // pred_check_branch
        %116 = sbr.rel (%p114) target = $region20
      $region19: #{tpu_custom_call.1} parent=5 // pred_region
        // Predicated region
        $region21: #{tpu_custom_call.1} parent=19 // pred_check
          %p117 = pneg %p32
        $region22: #{tpu_custom_call.1} parent=19 // pred_check_branch
          %119 = sbr.rel (%p117) target = $region24
        $region23: #{tpu_custom_call.1} parent=19 // pred_region
          %s120 = sand.u32 %s22, 1
          %s121 = scalar_lea.sflag [#allocation3], %s120
          %s122 = sand.u32 %s22, 1
          %s123 = smul.addr %s122, 16
          %s124 = scalar_lea.vmem [#allocation2], %s123
          %s125 = smul.u32 2, %s12
          %s127 = ssub.s32 256, 256
          %128 = vsyncadd %s121, %s127
          %s129 = smul.addr %s125, 128
          %s130 = scalar_lea.hbm %s0, %s129
          %s131 = sshll.u32 %s124, 4
          %s132 = int_to_ptr.vmem [resolvable:$true] %s131
          %137 = dma.hbm_to_vmem [thread:$0]  %s130, 256, %s132, %s121, 128, 128, 8
        $region24: #{tpu_custom_call.1} parent=19 // pred_fallthru
          _
      $region20: #{tpu_custom_call.1} parent=5 // pred_fallthru
        _
      %p138 = scmp.le.s32.totalorder 1, %s12
      %p139 = scmp.lt.s32.totalorder %s12, 3
      %p140 = pnand %p138, %p139
      %p141 = pneg %p140
      // Predicated region
      $region25: #{tpu_custom_call.1} parent=5 // pred_check
        _
      $region26: #{tpu_custom_call.1} parent=5 // pred_check_branch
        %143 = sbr.rel (%p140) target = $region28
      $region27: #{tpu_custom_call.1} parent=5 // pred_region
        %s144 = ssub.s32 %s12, 1
        %s145 = sand.u32 %s25, 1
        %s146 = scalar_lea.sflag [#allocation3], %s145
        %s147 = sand.u32 %s25, 1
        %s148 = smul.addr %s147, 16
        %s149 = scalar_lea.vmem [#allocation2], %s148
        // Predicated region
        $region29: #{tpu_custom_call.1} parent=27 // pred_check
          %p150 = pneg %p38
        $region30: #{tpu_custom_call.1} parent=27 // pred_check_branch
          %152 = sbr.rel (%p150) target = $region32
        $region31: #{tpu_custom_call.1} parent=27 // pred_region
          %153 = dma.done %s146, 256
        $region32: #{tpu_custom_call.1} parent=27 // pred_fallthru
          _
        // Predicated region
        $region33: #{tpu_custom_call.1} parent=27 // pred_check
          %p154 = pneg %p59
        $region34: #{tpu_custom_call.1} parent=27 // pred_check_branch
          %156 = sbr.rel (%p154) target = $region36
        $region35: #{tpu_custom_call.1} parent=27 // pred_region
          %157 = dma.done [#allocation5], 2048
        $region36: #{tpu_custom_call.1} parent=27 // pred_fallthru
          _
        %s158 = sand.u32 %s25, 1
        %s159 = scalar_lea.sflag [#allocation3], %s158
        %s160 = sand.u32 %s25, 1
        %s161 = smul.addr %s160, 16
        %s162 = scalar_lea.vmem [#allocation2], %s161
        %p163 = pneg %p38
        %p164 = pneg %p35
        %p165 = pneg %p59
        %p166 = pneg %p56
        %p167 = pneg %p85
        %p168 = pneg %p82
        %p169 = scmp.lt.s32.totalorder %s17, 1
        %s170 = scalar_select %p169, %s17, 1
        %s171 = smul.addr %s170, 16
        %s172 = smul.addr %s171, 4
        %s173 = scalar_lea.vmem %s2, %s172
        %s174 = smul.u32 2, %s17
        %p175 = scmp.lt.s32.totalorder %s17, 1
        %s176 = scalar_select %p175, %s17, 1
        %s177 = smul.addr %s176, 16
        %s178 = smul.addr %s177, 4
        %s179 = scalar_lea.vmem %s2, %s178
        %v180 = vld [vmem:[%s149] sm:$0xff]
        %v181 = vld [vmem:[%s149 + $0x8] sm:$0xff]
        %v182 = vld [vmem:[#allocation4] sm:$0xff]
        %v183 = vld [vmem:[#allocation4 + $0x8] sm:$0xff]
        %v184 = vld [vmem:[#allocation4 + $0x10] sm:$0xff]
        %v185 = vld [vmem:[#allocation4 + $0x18] sm:$0xff]
        %v186 = vld [vmem:[#allocation4 + $0x20] sm:$0xff]
        %v187 = vld [vmem:[#allocation4 + $0x28] sm:$0xff]
        %v188 = vld [vmem:[#allocation4 + $0x30] sm:$0xff]
        %v189 = vld [vmem:[#allocation4 + $0x38] sm:$0xff]
        %v190 = vld [vmem:[#allocation4 + $0x40] sm:$0xff]
        %v191 = vld [vmem:[#allocation4 + $0x48] sm:$0xff]
        %v192 = vld [vmem:[#allocation4 + $0x50] sm:$0xff]
        %v193 = vld [vmem:[#allocation4 + $0x58] sm:$0xff]
        %v194 = vld [vmem:[#allocation4 + $0x60] sm:$0xff]
        %v195 = vld [vmem:[#allocation4 + $0x68] sm:$0xff]
        %v196 = vld [vmem:[#allocation4 + $0x70] sm:$0xff]
        %v197 = vld [vmem:[#allocation4 + $0x78] sm:$0xff]
        %198 = vmatprep.subr.mxu0 0.0
        %v199 = vand.u32 %v182, 4294901760
        %200 = vmatpush1.msra.mxu0 %v199
        %201 = vmatprep.subr.mxu0 0.0
        %v202 = vand.u32 %v183, 4294901760
        %203 = vmatpush1.msra.mxu0 %v202
        %204 = vmatprep.subr.mxu0 0.0
        %v205 = vand.u32 %v184, 4294901760
        %206 = vmatpush1.msra.mxu0 %v205
        %207 = vmatprep.subr.mxu0 0.0
        %v208 = vand.u32 %v185, 4294901760
        %209 = vmatpush1.msra.mxu0 %v208
        %210 = vmatprep.subr.mxu0 0.0
        %v211 = vand.u32 %v186, 4294901760
        %212 = vmatpush1.msra.mxu0 %v211
        %213 = vmatprep.subr.mxu0 0.0
        %v214 = vand.u32 %v187, 4294901760
        %215 = vmatpush1.msra.mxu0 %v214
        %216 = vmatprep.subr.mxu0 0.0
        %v217 = vand.u32 %v188, 4294901760
        %218 = vmatpush1.msra.mxu0 %v217
        %219 = vmatprep.subr.mxu0 0.0
        %v220 = vand.u32 %v189, 4294901760
        %221 = vmatpush1.msra.mxu0 %v220
        %222 = vmatprep.subr.mxu0 0.0
        %v223 = vand.u32 %v190, 4294901760
        %224 = vmatpush1.msra.mxu0 %v223
        %225 = vmatprep.subr.mxu0 0.0
        %v226 = vand.u32 %v191, 4294901760
        %227 = vmatpush1.msra.mxu0 %v226
        %228 = vmatprep.subr.mxu0 0.0
        %v229 = vand.u32 %v192, 4294901760
        %230 = vmatpush1.msra.mxu0 %v229
        %231 = vmatprep.subr.mxu0 0.0
        %v232 = vand.u32 %v193, 4294901760
        %233 = vmatpush1.msra.mxu0 %v232
        %234 = vmatprep.subr.mxu0 0.0
        %v235 = vand.u32 %v194, 4294901760
        %236 = vmatpush1.msra.mxu0 %v235
        %237 = vmatprep.subr.mxu0 0.0
        %v238 = vand.u32 %v195, 4294901760
        %239 = vmatpush1.msra.mxu0 %v238
        %240 = vmatprep.subr.mxu0 0.0
        %v241 = vand.u32 %v196, 4294901760
        %242 = vmatpush1.msra.mxu0 %v241
        %243 = vmatprep.subr.mxu0 0.0
        %v244 = vand.u32 %v197, 4294901760
        %245 = vmatpush1.msra.mxu0 %v244
        %246 = vmatprep.subr.mxu0 0.0
        %247 = vmatpush1.msra.mxu0 0.0
        %248 = vmatprep.subr.mxu0 0.0
        %249 = vmatpush1.msra.mxu0 0.0
        %250 = vmatprep.subr.mxu0 0.0
        %251 = vmatpush1.msra.mxu0 0.0
        %252 = vmatprep.subr.mxu0 0.0
        %253 = vmatpush1.msra.mxu0 0.0
        %254 = vmatprep.subr.mxu0 0.0
        %255 = vmatpush1.msra.mxu0 0.0
        %256 = vmatprep.subr.mxu0 0.0
        %257 = vmatpush1.msra.mxu0 0.0
        %258 = vmatprep.subr.mxu0 0.0
        %259 = vmatpush1.msra.mxu0 0.0
        %260 = vmatprep.subr.mxu0 0.0
        %261 = vmatpush1.msra.mxu0 0.0
        %262 = vmatprep.subr.mxu0 0.0
        %263 = vmatpush1.msra.mxu0 0.0
        %264 = vmatprep.subr.mxu0 0.0
        %265 = vmatpush1.msra.mxu0 0.0
        %266 = vmatprep.subr.mxu0 0.0
        %267 = vmatpush1.msra.mxu0 0.0
        %268 = vmatprep.subr.mxu0 0.0
        %269 = vmatpush1.msra.mxu0 0.0
        %270 = vmatprep.subr.mxu0 0.0
        %271 = vmatpush1.msra.mxu0 0.0
        %272 = vmatprep.subr.mxu0 0.0
        %273 = vmatpush1.msra.mxu0 0.0
        %274 = vmatprep.subr.mxu0 0.0
        %275 = vmatpush1.msra.mxu0 0.0
        %276 = vmatprep.subr.mxu0 0.0
        %277 = vmatpush1.msra.mxu0 0.0
        %278 = vmatprep.mubr.f32.mxu0 0.0
        %v279 = vand.u32 %v180, 4294901760
        %v280 = vsub.f32 %v180, %v279
        %v281 = vand.u32 %v280, 4294901760
        %v282 = vsub.f32 %v280, %v281
        %v283 = vand.u32 %v282, 4294901760
        %284 = vmatmul.mubr.f32.gmra.mrb[0].mxu0 %v283
        %v285 = vpop.f32.mrb[0].mxu0
        %v286 = vadd.f32 0.0, %v285
        %v287 = vpop.f32.mrb[0].mxu0
        %288 = vmatprep.mubr.f32.mxu0 0.0
        %v289 = vand.u32 %v181, 4294901760
        %v290 = vsub.f32 %v181, %v289
        %v291 = vand.u32 %v290, 4294901760
        %v292 = vsub.f32 %v290, %v291
        %v293 = vand.u32 %v292, 4294901760
        %294 = vmatmul.mubr.f32.gmra.mrb[0].mxu0 %v293
        %v295 = vpop.f32.mrb[0].mxu0
        %v296 = vadd.f32 0.0, %v295
        %v297 = vpop.f32.mrb[0].mxu0
        %298 = vdwg.mxu0
        %299 = vmatprep.subr.mxu0 0.0
        %v300 = vand.u32 %v182, 4294901760
        %v301 = vsub.f32 %v182, %v300
        %v302 = vand.u32 %v301, 4294901760
        %v303 = vsub.f32 %v301, %v302
        %v304 = vand.u32 %v303, 4294901760
        %305 = vmatpush1.msra.mxu0 %v304
        %306 = vmatprep.subr.mxu0 0.0
        %v307 = vand.u32 %v183, 4294901760
        %v308 = vsub.f32 %v183, %v307
        %v309 = vand.u32 %v308, 4294901760
        %v310 = vsub.f32 %v308, %v309
        %v311 = vand.u32 %v310, 4294901760
        %312 = vmatpush1.msra.mxu0 %v311
        %313 = vmatprep.subr.mxu0 0.0
        %v314 = vand.u32 %v184, 4294901760
        %v315 = vsub.f32 %v184, %v314
        %v316 = vand.u32 %v315, 4294901760
        %v317 = vsub.f32 %v315, %v316
        %v318 = vand.u32 %v317, 4294901760
        %319 = vmatpush1.msra.mxu0 %v318
        %320 = vmatprep.subr.mxu0 0.0
        %v321 = vand.u32 %v185, 4294901760
        %v322 = vsub.f32 %v185, %v321
        %v323 = vand.u32 %v322, 4294901760
        %v324 = vsub.f32 %v322, %v323
        %v325 = vand.u32 %v324, 4294901760
        %326 = vmatpush1.msra.mxu0 %v325
        %327 = vmatprep.subr.mxu0 0.0
        %v328 = vand.u32 %v186, 4294901760
        %v329 = vsub.f32 %v186, %v328
        %v330 = vand.u32 %v329, 4294901760
        %v331 = vsub.f32 %v329, %v330
        %v332 = vand.u32 %v331, 4294901760
        %333 = vmatpush1.msra.mxu0 %v332
        %334 = vmatprep.subr.mxu0 0.0
        %v335 = vand.u32 %v187, 4294901760
        %v336 = vsub.f32 %v187, %v335
        %v337 = vand.u32 %v336, 4294901760
        %v338 = vsub.f32 %v336, %v337
        %v339 = vand.u32 %v338, 4294901760
        %340 = vmatpush1.msra.mxu0 %v339
        %341 = vmatprep.subr.mxu0 0.0
        %v342 = vand.u32 %v188, 4294901760
        %v343 = vsub.f32 %v188, %v342
        %v344 = vand.u32 %v343, 4294901760
        %v345 = vsub.f32 %v343, %v344
        %v346 = vand.u32 %v345, 4294901760
        %347 = vmatpush1.msra.mxu0 %v346
        %348 = vmatprep.subr.mxu0 0.0
        %v349 = vand.u32 %v189, 4294901760
        %v350 = vsub.f32 %v189, %v349
        %v351 = vand.u32 %v350, 4294901760
        %v352 = vsub.f32 %v350, %v351
        %v353 = vand.u32 %v352, 4294901760
        %354 = vmatpush1.msra.mxu0 %v353
        %355 = vmatprep.subr.mxu0 0.0
        %v356 = vand.u32 %v190, 4294901760
        %v357 = vsub.f32 %v190, %v356
        %v358 = vand.u32 %v357, 4294901760
        %v359 = vsub.f32 %v357, %v358
        %v360 = vand.u32 %v359, 4294901760
        %361 = vmatpush1.msra.mxu0 %v360
        %362 = vmatprep.subr.mxu0 0.0
        %v363 = vand.u32 %v191, 4294901760
        %v364 = vsub.f32 %v191, %v363
        %v365 = vand.u32 %v364, 4294901760
        %v366 = vsub.f32 %v364, %v365
        %v367 = vand.u32 %v366, 4294901760
        %368 = vmatpush1.msra.mxu0 %v367
        %369 = vmatprep.subr.mxu0 0.0
        %v370 = vand.u32 %v192, 4294901760
        %v371 = vsub.f32 %v192, %v370
        %v372 = vand.u32 %v371, 4294901760
        %v373 = vsub.f32 %v371, %v372
        %v374 = vand.u32 %v373, 4294901760
        %375 = vmatpush1.msra.mxu0 %v374
        %376 = vmatprep.subr.mxu0 0.0
        %v377 = vand.u32 %v193, 4294901760
        %v378 = vsub.f32 %v193, %v377
        %v379 = vand.u32 %v378, 4294901760
        %v380 = vsub.f32 %v378, %v379
        %v381 = vand.u32 %v380, 4294901760
        %382 = vmatpush1.msra.mxu0 %v381
        %383 = vmatprep.subr.mxu0 0.0
        %v384 = vand.u32 %v194, 4294901760
        %v385 = vsub.f32 %v194, %v384
        %v386 = vand.u32 %v385, 4294901760
        %v387 = vsub.f32 %v385, %v386
        %v388 = vand.u32 %v387, 4294901760
        %389 = vmatpush1.msra.mxu0 %v388
        %390 = vmatprep.subr.mxu0 0.0
        %v391 = vand.u32 %v195, 4294901760
        %v392 = vsub.f32 %v195, %v391
        %v393 = vand.u32 %v392, 4294901760
        %v394 = vsub.f32 %v392, %v393
        %v395 = vand.u32 %v394, 4294901760
        %396 = vmatpush1.msra.mxu0 %v395
        %397 = vmatprep.subr.mxu0 0.0
        %v398 = vand.u32 %v196, 4294901760
        %v399 = vsub.f32 %v196, %v398
        %v400 = vand.u32 %v399, 4294901760
        %v401 = vsub.f32 %v399, %v400
        %v402 = vand.u32 %v401, 4294901760
        %403 = vmatpush1.msra.mxu0 %v402
        %404 = vmatprep.subr.mxu0 0.0
        %v405 = vand.u32 %v197, 4294901760
        %v406 = vsub.f32 %v197, %v405
        %v407 = vand.u32 %v406, 4294901760
        %v408 = vsub.f32 %v406, %v407
        %v409 = vand.u32 %v408, 4294901760
        %410 = vmatpush1.msra.mxu0 %v409
        %411 = vmatprep.subr.mxu0 0.0
        %412 = vmatpush1.msra.mxu0 0.0
        %413 = vmatprep.subr.mxu0 0.0
        %414 = vmatpush1.msra.mxu0 0.0
        %415 = vmatprep.subr.mxu0 0.0
        %416 = vmatpush1.msra.mxu0 0.0
        %417 = vmatprep.subr.mxu0 0.0
        %418 = vmatpush1.msra.mxu0 0.0
        %419 = vmatprep.subr.mxu0 0.0
        %420 = vmatpush1.msra.mxu0 0.0
        %421 = vmatprep.subr.mxu0 0.0
        %422 = vmatpush1.msra.mxu0 0.0
        %423 = vmatprep.subr.mxu0 0.0
        %424 = vmatpush1.msra.mxu0 0.0
        %425 = vmatprep.subr.mxu0 0.0
        %426 = vmatpush1.msra.mxu0 0.0
        %427 = vmatprep.subr.mxu0 0.0
        %428 = vmatpush1.msra.mxu0 0.0
        %429 = vmatprep.subr.mxu0 0.0
        %430 = vmatpush1.msra.mxu0 0.0
        %431 = vmatprep.subr.mxu0 0.0
        %432 = vmatpush1.msra.mxu0 0.0
        %433 = vmatprep.subr.mxu0 0.0
        %434 = vmatpush1.msra.mxu0 0.0
        %435 = vmatprep.subr.mxu0 0.0
        %436 = vmatpush1.msra.mxu0 0.0
        %437 = vmatprep.subr.mxu0 0.0
        %438 = vmatpush1.msra.mxu0 0.0
        %439 = vmatprep.subr.mxu0 0.0
        %440 = vmatpush1.msra.mxu0 0.0
        %441 = vmatprep.subr.mxu0 0.0
        %442 = vmatpush1.msra.mxu0 0.0
        %443 = vmatprep.mubr.f32.mxu0 0.0
        %v444 = vand.u32 %v180, 4294901760
        %445 = vmatmul.mubr.f32.gmra.mrb[0].mxu0 %v444
        %v446 = vpop.f32.mrb[0].mxu0
        %v447 = vadd.f32 %v286, %v446
        %v448 = vpop.f32.mrb[0].mxu0
        %449 = vmatprep.mubr.f32.mxu0 0.0
        %v450 = vand.u32 %v181, 4294901760
        %451 = vmatmul.mubr.f32.gmra.mrb[0].mxu0 %v450
        %v452 = vpop.f32.mrb[0].mxu0
        %v453 = vadd.f32 %v296, %v452
        %v454 = vpop.f32.mrb[0].mxu0
        %455 = vdwg.mxu0
        %456 = vmatprep.subr.mxu0 0.0
        %v457 = vand.u32 %v182, 4294901760
        %v458 = vsub.f32 %v182, %v457
        %459 = vmatpush1.msra.mxu0 %v458
        %460 = vmatprep.subr.mxu0 0.0
        %v461 = vand.u32 %v183, 4294901760
        %v462 = vsub.f32 %v183, %v461
        %463 = vmatpush1.msra.mxu0 %v462
        %464 = vmatprep.subr.mxu0 0.0
        %v465 = vand.u32 %v184, 4294901760
        %v466 = vsub.f32 %v184, %v465
        %467 = vmatpush1.msra.mxu0 %v466
        %468 = vmatprep.subr.mxu0 0.0
        %v469 = vand.u32 %v185, 4294901760
        %v470 = vsub.f32 %v185, %v469
        %471 = vmatpush1.msra.mxu0 %v470
        %472 = vmatprep.subr.mxu0 0.0
        %v473 = vand.u32 %v186, 4294901760
        %v474 = vsub.f32 %v186, %v473
        %475 = vmatpush1.msra.mxu0 %v474
        %476 = vmatprep.subr.mxu0 0.0
        %v477 = vand.u32 %v187, 4294901760
        %v478 = vsub.f32 %v187, %v477
        %479 = vmatpush1.msra.mxu0 %v478
        %480 = vmatprep.subr.mxu0 0.0
        %v481 = vand.u32 %v188, 4294901760
        %v482 = vsub.f32 %v188, %v481
        %483 = vmatpush1.msra.mxu0 %v482
        %484 = vmatprep.subr.mxu0 0.0
        %v485 = vand.u32 %v189, 4294901760
        %v486 = vsub.f32 %v189, %v485
        %487 = vmatpush1.msra.mxu0 %v486
        %488 = vmatprep.subr.mxu0 0.0
        %v489 = vand.u32 %v190, 4294901760
        %v490 = vsub.f32 %v190, %v489
        %491 = vmatpush1.msra.mxu0 %v490
        %492 = vmatprep.subr.mxu0 0.0
        %v493 = vand.u32 %v191, 4294901760
        %v494 = vsub.f32 %v191, %v493
        %495 = vmatpush1.msra.mxu0 %v494
        %496 = vmatprep.subr.mxu0 0.0
        %v497 = vand.u32 %v192, 4294901760
        %v498 = vsub.f32 %v192, %v497
        %499 = vmatpush1.msra.mxu0 %v498
        %500 = vmatprep.subr.mxu0 0.0
        %v501 = vand.u32 %v193, 4294901760
        %v502 = vsub.f32 %v193, %v501
        %503 = vmatpush1.msra.mxu0 %v502
        %504 = vmatprep.subr.mxu0 0.0
        %v505 = vand.u32 %v194, 4294901760
        %v506 = vsub.f32 %v194, %v505
        %507 = vmatpush1.msra.mxu0 %v506
        %508 = vmatprep.subr.mxu0 0.0
        %v509 = vand.u32 %v195, 4294901760
        %v510 = vsub.f32 %v195, %v509
        %511 = vmatpush1.msra.mxu0 %v510
        %512 = vmatprep.subr.mxu0 0.0
        %v513 = vand.u32 %v196, 4294901760
        %v514 = vsub.f32 %v196, %v513
        %515 = vmatpush1.msra.mxu0 %v514
        %516 = vmatprep.subr.mxu0 0.0
        %v517 = vand.u32 %v197, 4294901760
        %v518 = vsub.f32 %v197, %v517
        %519 = vmatpush1.msra.mxu0 %v518
        %520 = vmatprep.subr.mxu0 0.0
        %521 = vmatpush1.msra.mxu0 0.0
        %522 = vmatprep.subr.mxu0 0.0
        %523 = vmatpush1.msra.mxu0 0.0
        %524 = vmatprep.subr.mxu0 0.0
        %525 = vmatpush1.msra.mxu0 0.0
        %526 = vmatprep.subr.mxu0 0.0
        %527 = vmatpush1.msra.mxu0 0.0
        %528 = vmatprep.subr.mxu0 0.0
        %529 = vmatpush1.msra.mxu0 0.0
        %530 = vmatprep.subr.mxu0 0.0
        %531 = vmatpush1.msra.mxu0 0.0
        %532 = vmatprep.subr.mxu0 0.0
        %533 = vmatpush1.msra.mxu0 0.0
        %534 = vmatprep.subr.mxu0 0.0
        %535 = vmatpush1.msra.mxu0 0.0
        %536 = vmatprep.subr.mxu0 0.0
        %537 = vmatpush1.msra.mxu0 0.0
        %538 = vmatprep.subr.mxu0 0.0
        %539 = vmatpush1.msra.mxu0 0.0
        %540 = vmatprep.subr.mxu0 0.0
        %541 = vmatpush1.msra.mxu0 0.0
        %542 = vmatprep.subr.mxu0 0.0
        %543 = vmatpush1.msra.mxu0 0.0
        %544 = vmatprep.subr.mxu0 0.0
        %545 = vmatpush1.msra.mxu0 0.0
        %546 = vmatprep.subr.mxu0 0.0
        %547 = vmatpush1.msra.mxu0 0.0
        %548 = vmatprep.subr.mxu0 0.0
        %549 = vmatpush1.msra.mxu0 0.0
        %550 = vmatprep.subr.mxu0 0.0
        %551 = vmatpush1.msra.mxu0 0.0
        %552 = vmatprep.mubr.f32.mxu0 0.0
        %v553 = vand.u32 %v180, 4294901760
        %v554 = vsub.f32 %v180, %v553
        %555 = vmatmul.mubr.f32.gmra.mrb[0].mxu0 %v554
        %v556 = vpop.f32.mrb[0].mxu0
        %v557 = vadd.f32 %v447, %v556
        %v558 = vpop.f32.mrb[0].mxu0
        %559 = vmatprep.mubr.f32.mxu0 0.0
        %v560 = vand.u32 %v181, 4294901760
        %v561 = vsub.f32 %v181, %v560
        %562 = vmatmul.mubr.f32.gmra.mrb[0].mxu0 %v561
        %v563 = vpop.f32.mrb[0].mxu0
        %v564 = vadd.f32 %v453, %v563
        %v565 = vpop.f32.mrb[0].mxu0
        %566 = vdwg.mxu0
        %567 = vmatprep.subr.mxu0 0.0
        %v568 = vand.u32 %v182, 4294901760
        %569 = vmatpush1.msra.mxu0 %v568
        %570 = vmatprep.subr.mxu0 0.0
        %v571 = vand.u32 %v183, 4294901760
        %572 = vmatpush1.msra.mxu0 %v571
        %573 = vmatprep.subr.mxu0 0.0
        %v574 = vand.u32 %v184, 4294901760
        %575 = vmatpush1.msra.mxu0 %v574
        %576 = vmatprep.subr.mxu0 0.0
        %v577 = vand.u32 %v185, 4294901760
        %578 = vmatpush1.msra.mxu0 %v577
        %579 = vmatprep.subr.mxu0 0.0
        %v580 = vand.u32 %v186, 4294901760
        %581 = vmatpush1.msra.mxu0 %v580
        %582 = vmatprep.subr.mxu0 0.0
        %v583 = vand.u32 %v187, 4294901760
        %584 = vmatpush1.msra.mxu0 %v583
        %585 = vmatprep.subr.mxu0 0.0
        %v586 = vand.u32 %v188, 4294901760
        %587 = vmatpush1.msra.mxu0 %v586
        %588 = vmatprep.subr.mxu0 0.0
        %v589 = vand.u32 %v189, 4294901760
        %590 = vmatpush1.msra.mxu0 %v589
        %591 = vmatprep.subr.mxu0 0.0
        %v592 = vand.u32 %v190, 4294901760
        %593 = vmatpush1.msra.mxu0 %v592
        %594 = vmatprep.subr.mxu0 0.0
        %v595 = vand.u32 %v191, 4294901760
        %596 = vmatpush1.msra.mxu0 %v595
        %597 = vmatprep.subr.mxu0 0.0
        %v598 = vand.u32 %v192, 4294901760
        %599 = vmatpush1.msra.mxu0 %v598
        %600 = vmatprep.subr.mxu0 0.0
        %v601 = vand.u32 %v193, 4294901760
        %602 = vmatpush1.msra.mxu0 %v601
        %603 = vmatprep.subr.mxu0 0.0
        %v604 = vand.u32 %v194, 4294901760
        %605 = vmatpush1.msra.mxu0 %v604
        %606 = vmatprep.subr.mxu0 0.0
        %v607 = vand.u32 %v195, 4294901760
        %608 = vmatpush1.msra.mxu0 %v607
        %609 = vmatprep.subr.mxu0 0.0
        %v610 = vand.u32 %v196, 4294901760
        %611 = vmatpush1.msra.mxu0 %v610
        %612 = vmatprep.subr.mxu0 0.0
        %v613 = vand.u32 %v197, 4294901760
        %614 = vmatpush1.msra.mxu0 %v613
        %615 = vmatprep.subr.mxu0 0.0
        %616 = vmatpush1.msra.mxu0 0.0
        %617 = vmatprep.subr.mxu0 0.0
        %618 = vmatpush1.msra.mxu0 0.0
        %619 = vmatprep.subr.mxu0 0.0
        %620 = vmatpush1.msra.mxu0 0.0
        %621 = vmatprep.subr.mxu0 0.0
        %622 = vmatpush1.msra.mxu0 0.0
        %623 = vmatprep.subr.mxu0 0.0
        %624 = vmatpush1.msra.mxu0 0.0
        %625 = vmatprep.subr.mxu0 0.0
        %626 = vmatpush1.msra.mxu0 0.0
        %627 = vmatprep.subr.mxu0 0.0
        %628 = vmatpush1.msra.mxu0 0.0
        %629 = vmatprep.subr.mxu0 0.0
        %630 = vmatpush1.msra.mxu0 0.0
        %631 = vmatprep.subr.mxu0 0.0
        %632 = vmatpush1.msra.mxu0 0.0
        %633 = vmatprep.subr.mxu0 0.0
        %634 = vmatpush1.msra.mxu0 0.0
        %635 = vmatprep.subr.mxu0 0.0
        %636 = vmatpush1.msra.mxu0 0.0
        %637 = vmatprep.subr.mxu0 0.0
        %638 = vmatpush1.msra.mxu0 0.0
        %639 = vmatprep.subr.mxu0 0.0
        %640 = vmatpush1.msra.mxu0 0.0
        %641 = vmatprep.subr.mxu0 0.0
        %642 = vmatpush1.msra.mxu0 0.0
        %643 = vmatprep.subr.mxu0 0.0
        %644 = vmatpush1.msra.mxu0 0.0
        %645 = vmatprep.subr.mxu0 0.0
        %646 = vmatpush1.msra.mxu0 0.0
        %647 = vmatprep.mubr.f32.mxu0 0.0
        %v648 = vand.u32 %v180, 4294901760
        %v649 = vsub.f32 %v180, %v648
        %v650 = vand.u32 %v649, 4294901760
        %651 = vmatmul.mubr.f32.gmra.mrb[0].mxu0 %v650
        %v652 = vpop.f32.mrb[0].mxu0
        %v653 = vadd.f32 %v557, %v652
        %v654 = vpop.f32.mrb[0].mxu0
        %655 = vmatprep.mubr.f32.mxu0 0.0
        %v656 = vand.u32 %v181, 4294901760
        %v657 = vsub.f32 %v181, %v656
        %v658 = vand.u32 %v657, 4294901760
        %659 = vmatmul.mubr.f32.gmra.mrb[0].mxu0 %v658
        %v660 = vpop.f32.mrb[0].mxu0
        %v661 = vadd.f32 %v564, %v660
        %v662 = vpop.f32.mrb[0].mxu0
        %663 = vdwg.mxu0
        %664 = vmatprep.subr.mxu0 0.0
        %v665 = vand.u32 %v182, 4294901760
        %v666 = vsub.f32 %v182, %v665
        %v667 = vand.u32 %v666, 4294901760
        %668 = vmatpush1.msra.mxu0 %v667
        %669 = vmatprep.subr.mxu0 0.0
        %v670 = vand.u32 %v183, 4294901760
        %v671 = vsub.f32 %v183, %v670
        %v672 = vand.u32 %v671, 4294901760
        %673 = vmatpush1.msra.mxu0 %v672
        %674 = vmatprep.subr.mxu0 0.0
        %v675 = vand.u32 %v184, 4294901760
        %v676 = vsub.f32 %v184, %v675
        %v677 = vand.u32 %v676, 4294901760
        %678 = vmatpush1.msra.mxu0 %v677
        %679 = vmatprep.subr.mxu0 0.0
        %v680 = vand.u32 %v185, 4294901760
        %v681 = vsub.f32 %v185, %v680
        %v682 = vand.u32 %v681, 4294901760
        %683 = vmatpush1.msra.mxu0 %v682
        %684 = vmatprep.subr.mxu0 0.0
        %v685 = vand.u32 %v186, 4294901760
        %v686 = vsub.f32 %v186, %v685
        %v687 = vand.u32 %v686, 4294901760
        %688 = vmatpush1.msra.mxu0 %v687
        %689 = vmatprep.subr.mxu0 0.0
        %v690 = vand.u32 %v187, 4294901760
        %v691 = vsub.f32 %v187, %v690
        %v692 = vand.u32 %v691, 4294901760
        %693 = vmatpush1.msra.mxu0 %v692
        %694 = vmatprep.subr.mxu0 0.0
        %v695 = vand.u32 %v188, 4294901760
        %v696 = vsub.f32 %v188, %v695
        %v697 = vand.u32 %v696, 4294901760
        %698 = vmatpush1.msra.mxu0 %v697
        %699 = vmatprep.subr.mxu0 0.0
        %v700 = vand.u32 %v189, 4294901760
        %v701 = vsub.f32 %v189, %v700
        %v702 = vand.u32 %v701, 4294901760
        %703 = vmatpush1.msra.mxu0 %v702
        %704 = vmatprep.subr.mxu0 0.0
        %v705 = vand.u32 %v190, 4294901760
        %v706 = vsub.f32 %v190, %v705
        %v707 = vand.u32 %v706, 4294901760
        %708 = vmatpush1.msra.mxu0 %v707
        %709 = vmatprep.subr.mxu0 0.0
        %v710 = vand.u32 %v191, 4294901760
        %v711 = vsub.f32 %v191, %v710
        %v712 = vand.u32 %v711, 4294901760
        %713 = vmatpush1.msra.mxu0 %v712
        %714 = vmatprep.subr.mxu0 0.0
        %v715 = vand.u32 %v192, 4294901760
        %v716 = vsub.f32 %v192, %v715
        %v717 = vand.u32 %v716, 4294901760
        %718 = vmatpush1.msra.mxu0 %v717
        %719 = vmatprep.subr.mxu0 0.0
        %v720 = vand.u32 %v193, 4294901760
        %v721 = vsub.f32 %v193, %v720
        %v722 = vand.u32 %v721, 4294901760
        %723 = vmatpush1.msra.mxu0 %v722
        %724 = vmatprep.subr.mxu0 0.0
        %v725 = vand.u32 %v194, 4294901760
        %v726 = vsub.f32 %v194, %v725
        %v727 = vand.u32 %v726, 4294901760
        %728 = vmatpush1.msra.mxu0 %v727
        %729 = vmatprep.subr.mxu0 0.0
        %v730 = vand.u32 %v195, 4294901760
        %v731 = vsub.f32 %v195, %v730
        %v732 = vand.u32 %v731, 4294901760
        %733 = vmatpush1.msra.mxu0 %v732
        %734 = vmatprep.subr.mxu0 0.0
        %v735 = vand.u32 %v196, 4294901760
        %v736 = vsub.f32 %v196, %v735
        %v737 = vand.u32 %v736, 4294901760
        %738 = vmatpush1.msra.mxu0 %v737
        %739 = vmatprep.subr.mxu0 0.0
        %v740 = vand.u32 %v197, 4294901760
        %v741 = vsub.f32 %v197, %v740
        %v742 = vand.u32 %v741, 4294901760
        %743 = vmatpush1.msra.mxu0 %v742
        %744 = vmatprep.subr.mxu0 0.0
        %745 = vmatpush1.msra.mxu0 0.0
        %746 = vmatprep.subr.mxu0 0.0
        %747 = vmatpush1.msra.mxu0 0.0
        %748 = vmatprep.subr.mxu0 0.0
        %749 = vmatpush1.msra.mxu0 0.0
        %750 = vmatprep.subr.mxu0 0.0
        %751 = vmatpush1.msra.mxu0 0.0
        %752 = vmatprep.subr.mxu0 0.0
        %753 = vmatpush1.msra.mxu0 0.0
        %754 = vmatprep.subr.mxu0 0.0
        %755 = vmatpush1.msra.mxu0 0.0
        %756 = vmatprep.subr.mxu0 0.0
        %757 = vmatpush1.msra.mxu0 0.0
        %758 = vmatprep.subr.mxu0 0.0
        %759 = vmatpush1.msra.mxu0 0.0
        %760 = vmatprep.subr.mxu0 0.0
        %761 = vmatpush1.msra.mxu0 0.0
        %762 = vmatprep.subr.mxu0 0.0
        %763 = vmatpush1.msra.mxu0 0.0
        %764 = vmatprep.subr.mxu0 0.0
        %765 = vmatpush1.msra.mxu0 0.0
        %766 = vmatprep.subr.mxu0 0.0
        %767 = vmatpush1.msra.mxu0 0.0
        %768 = vmatprep.subr.mxu0 0.0
        %769 = vmatpush1.msra.mxu0 0.0
        %770 = vmatprep.subr.mxu0 0.0
        %771 = vmatpush1.msra.mxu0 0.0
        %772 = vmatprep.subr.mxu0 0.0
        %773 = vmatpush1.msra.mxu0 0.0
        %774 = vmatprep.subr.mxu0 0.0
        %775 = vmatpush1.msra.mxu0 0.0
        %776 = vmatprep.mubr.f32.mxu0 0.0
        %v777 = vand.u32 %v180, 4294901760
        %778 = vmatmul.mubr.f32.gmra.mrb[0].mxu0 %v777
        %v779 = vpop.f32.mrb[0].mxu0
        %v780 = vadd.f32 %v653, %v779
        %v781 = vpop.f32.mrb[0].mxu0
        %782 = vmatprep.mubr.f32.mxu0 0.0
        %v783 = vand.u32 %v181, 4294901760
        %784 = vmatmul.mubr.f32.gmra.mrb[0].mxu0 %v783
        %v785 = vpop.f32.mrb[0].mxu0
        %v786 = vadd.f32 %v661, %v785
        %v787 = vpop.f32.mrb[0].mxu0
        %788 = vdwg.mxu0
        %789 = vmatprep.subr.mxu0 0.0
        %v790 = vand.u32 %v182, 4294901760
        %791 = vmatpush1.msra.mxu0 %v790
        %792 = vmatprep.subr.mxu0 0.0
        %v793 = vand.u32 %v183, 4294901760
        %794 = vmatpush1.msra.mxu0 %v793
        %795 = vmatprep.subr.mxu0 0.0
        %v796 = vand.u32 %v184, 4294901760
        %797 = vmatpush1.msra.mxu0 %v796
        %798 = vmatprep.subr.mxu0 0.0
        %v799 = vand.u32 %v185, 4294901760
        %800 = vmatpush1.msra.mxu0 %v799
        %801 = vmatprep.subr.mxu0 0.0
        %v802 = vand.u32 %v186, 4294901760
        %803 = vmatpush1.msra.mxu0 %v802
        %804 = vmatprep.subr.mxu0 0.0
        %v805 = vand.u32 %v187, 4294901760
        %806 = vmatpush1.msra.mxu0 %v805
        %807 = vmatprep.subr.mxu0 0.0
        %v808 = vand.u32 %v188, 4294901760
        %809 = vmatpush1.msra.mxu0 %v808
        %810 = vmatprep.subr.mxu0 0.0
        %v811 = vand.u32 %v189, 4294901760
        %812 = vmatpush1.msra.mxu0 %v811
        %813 = vmatprep.subr.mxu0 0.0
        %v814 = vand.u32 %v190, 4294901760
        %815 = vmatpush1.msra.mxu0 %v814
        %816 = vmatprep.subr.mxu0 0.0
        %v817 = vand.u32 %v191, 4294901760
        %818 = vmatpush1.msra.mxu0 %v817
        %819 = vmatprep.subr.mxu0 0.0
        %v820 = vand.u32 %v192, 4294901760
        %821 = vmatpush1.msra.mxu0 %v820
        %822 = vmatprep.subr.mxu0 0.0
        %v823 = vand.u32 %v193, 4294901760
        %824 = vmatpush1.msra.mxu0 %v823
        %825 = vmatprep.subr.mxu0 0.0
        %v826 = vand.u32 %v194, 4294901760
        %827 = vmatpush1.msra.mxu0 %v826
        %828 = vmatprep.subr.mxu0 0.0
        %v829 = vand.u32 %v195, 4294901760
        %830 = vmatpush1.msra.mxu0 %v829
        %831 = vmatprep.subr.mxu0 0.0
        %v832 = vand.u32 %v196, 4294901760
        %833 = vmatpush1.msra.mxu0 %v832
        %834 = vmatprep.subr.mxu0 0.0
        %v835 = vand.u32 %v197, 4294901760
        %836 = vmatpush1.msra.mxu0 %v835
        %837 = vmatprep.subr.mxu0 0.0
        %838 = vmatpush1.msra.mxu0 0.0
        %839 = vmatprep.subr.mxu0 0.0
        %840 = vmatpush1.msra.mxu0 0.0
        %841 = vmatprep.subr.mxu0 0.0
        %842 = vmatpush1.msra.mxu0 0.0
        %843 = vmatprep.subr.mxu0 0.0
        %844 = vmatpush1.msra.mxu0 0.0
        %845 = vmatprep.subr.mxu0 0.0
        %846 = vmatpush1.msra.mxu0 0.0
        %847 = vmatprep.subr.mxu0 0.0
        %848 = vmatpush1.msra.mxu0 0.0
        %849 = vmatprep.subr.mxu0 0.0
        %850 = vmatpush1.msra.mxu0 0.0
        %851 = vmatprep.subr.mxu0 0.0
        %852 = vmatpush1.msra.mxu0 0.0
        %853 = vmatprep.subr.mxu0 0.0
        %854 = vmatpush1.msra.mxu0 0.0
        %855 = vmatprep.subr.mxu0 0.0
        %856 = vmatpush1.msra.mxu0 0.0
        %857 = vmatprep.subr.mxu0 0.0
        %858 = vmatpush1.msra.mxu0 0.0
        %859 = vmatprep.subr.mxu0 0.0
        %860 = vmatpush1.msra.mxu0 0.0
        %861 = vmatprep.subr.mxu0 0.0
        %862 = vmatpush1.msra.mxu0 0.0
        %863 = vmatprep.subr.mxu0 0.0
        %864 = vmatpush1.msra.mxu0 0.0
        %865 = vmatprep.subr.mxu0 0.0
        %866 = vmatpush1.msra.mxu0 0.0
        %867 = vmatprep.subr.mxu0 0.0
        %868 = vmatpush1.msra.mxu0 0.0
        %869 = vmatprep.mubr.f32.mxu0 0.0
        %v870 = vand.u32 %v180, 4294901760
        %871 = vmatmul.mubr.f32.gmra.mrb[0].mxu0 %v870
        %v872 = vpop.f32.mrb[0].mxu0
        %v873 = vadd.f32 %v780, %v872
        %v874 = vpop.f32.mrb[0].mxu0
        %875 = vmatprep.mubr.f32.mxu0 0.0
        %v876 = vand.u32 %v181, 4294901760
        %877 = vmatmul.mubr.f32.gmra.mrb[0].mxu0 %v876
        %v878 = vpop.f32.mrb[0].mxu0
        %v879 = vadd.f32 %v786, %v878
        %v880 = vpop.f32.mrb[0].mxu0
        %881 = vdwg.mxu0
        %v883 = vrot.slane %v873, 1
        %884 = vrot.lane.b32.xlu0 %v883, 32
        %v885 = vpop.permute.xlu0 %884
        %v887 = vrot.slane %v873, 2
        %888 = vrot.lane.b32.xlu0 %v887, 64
        %v889 = vpop.permute.xlu0 %888
        %v891 = vrot.slane %v873, 3
        %892 = vrot.lane.b32.xlu0 %v891, 96
        %v893 = vpop.permute.xlu0 %892
        %v895 = vrot.slane %v873, 4
        %v897 = vrot.slane %v873, 5
        %898 = vrot.lane.b32.xlu0 %v897, 32
        %v899 = vpop.permute.xlu0 %898
        %v901 = vrot.slane %v873, 6
        %902 = vrot.lane.b32.xlu0 %v901, 64
        %v903 = vpop.permute.xlu0 %902
        %v905 = vrot.slane %v873, 7
        %906 = vrot.lane.b32.xlu0 %v905, 96
        %v907 = vpop.permute.xlu0 %906
        %v910 = vrot.slane %v879, 1
        %911 = vrot.lane.b32.xlu0 %v910, 32
        %v912 = vpop.permute.xlu0 %911
        %v914 = vrot.slane %v879, 2
        %915 = vrot.lane.b32.xlu0 %v914, 64
        %v916 = vpop.permute.xlu0 %915
        %v918 = vrot.slane %v879, 3
        %919 = vrot.lane.b32.xlu0 %v918, 96
        %v920 = vpop.permute.xlu0 %919
        %v922 = vrot.slane %v879, 4
        %v924 = vrot.slane %v879, 5
        %925 = vrot.lane.b32.xlu0 %v924, 32
        %v926 = vpop.permute.xlu0 %925
        %v928 = vrot.slane %v879, 6
        %929 = vrot.lane.b32.xlu0 %v928, 64
        %v930 = vpop.permute.xlu0 %929
        %v932 = vrot.slane %v879, 7
        %933 = vrot.lane.b32.xlu0 %v932, 96
        %v934 = vpop.permute.xlu0 %933
        %vm936 = vcmask 261120
        %v937 = vsel %vm936, %v873, %v885
        %vm938 = vcmask 523264
        %v939 = vsel %vm938, %v937, %v889
        %vm940 = vcmask 785408
        %v941 = vsel %vm940, %v939, %v893
        %v942 = vsel %vm936, %v895, %v899
        %v943 = vsel %vm938, %v942, %v903
        %v944 = vsel %vm940, %v943, %v907
        %v945 = vsel %vm936, %v879, %v912
        %v946 = vsel %vm938, %v945, %v916
        %v947 = vsel %vm940, %v946, %v920
        %v948 = vsel %vm936, %v922, %v926
        %v949 = vsel %vm938, %v948, %v930
        %v950 = vsel %vm940, %v949, %v934
        %951 = vrot.lane.b32.xlu0 %v873, 96
        %v952 = vpop.permute.xlu0 %951
        %955 = vrot.lane.b32.xlu0 %v887, 32
        %v956 = vpop.permute.xlu0 %955
        %958 = vrot.lane.b32.xlu0 %v891, 64
        %v959 = vpop.permute.xlu0 %958
        %961 = vrot.lane.b32.xlu0 %v895, 96
        %v962 = vpop.permute.xlu0 %961
        %965 = vrot.lane.b32.xlu0 %v901, 32
        %v966 = vpop.permute.xlu0 %965
        %968 = vrot.lane.b32.xlu0 %v905, 64
        %v969 = vpop.permute.xlu0 %968
        %971 = vrot.lane.b32.xlu0 %v879, 96
        %v972 = vpop.permute.xlu0 %971
        %975 = vrot.lane.b32.xlu0 %v914, 32
        %v976 = vpop.permute.xlu0 %975
        %978 = vrot.lane.b32.xlu0 %v918, 64
        %v979 = vpop.permute.xlu0 %978
        %981 = vrot.lane.b32.xlu0 %v922, 96
        %v982 = vpop.permute.xlu0 %981
        %985 = vrot.lane.b32.xlu0 %v928, 32
        %v986 = vpop.permute.xlu0 %985
        %988 = vrot.lane.b32.xlu0 %v932, 64
        %v989 = vpop.permute.xlu0 %988
        %v991 = vsel %vm936, %v952, %v883
        %v992 = vsel %vm938, %v991, %v956
        %v993 = vsel %vm940, %v992, %v959
        %v994 = vsel %vm936, %v962, %v897
        %v995 = vsel %vm938, %v994, %v966
        %v996 = vsel %vm940, %v995, %v969
        %v997 = vsel %vm936, %v972, %v910
        %v998 = vsel %vm938, %v997, %v976
        %v999 = vsel %vm940, %v998, %v979
        %v1000 = vsel %vm936, %v982, %v924
        %v1001 = vsel %vm938, %v1000, %v986
        %v1002 = vsel %vm940, %v1001, %v989
        %1003 = vrot.lane.b32.xlu0 %v873, 64
        %v1004 = vpop.permute.xlu0 %1003
        %1006 = vrot.lane.b32.xlu0 %v883, 96
        %v1007 = vpop.permute.xlu0 %1006
        %1010 = vrot.lane.b32.xlu0 %v891, 32
        %v1011 = vpop.permute.xlu0 %1010
        %1013 = vrot.lane.b32.xlu0 %v895, 64
        %v1014 = vpop.permute.xlu0 %1013
        %1016 = vrot.lane.b32.xlu0 %v897, 96
        %v1017 = vpop.permute.xlu0 %1016
        %1020 = vrot.lane.b32.xlu0 %v905, 32
        %v1021 = vpop.permute.xlu0 %1020
        %1023 = vrot.lane.b32.xlu0 %v879, 64
        %v1024 = vpop.permute.xlu0 %1023
        %1026 = vrot.lane.b32.xlu0 %v910, 96
        %v1027 = vpop.permute.xlu0 %1026
        %1030 = vrot.lane.b32.xlu0 %v918, 32
        %v1031 = vpop.permute.xlu0 %1030
        %1033 = vrot.lane.b32.xlu0 %v922, 64
        %v1034 = vpop.permute.xlu0 %1033
        %1036 = vrot.lane.b32.xlu0 %v924, 96
        %v1037 = vpop.permute.xlu0 %1036
        %1040 = vrot.lane.b32.xlu0 %v932, 32
        %v1041 = vpop.permute.xlu0 %1040
        %v1043 = vsel %vm936, %v1004, %v1007
        %v1044 = vsel %vm938, %v1043, %v887
        %v1045 = vsel %vm940, %v1044, %v1011
        %v1046 = vsel %vm936, %v1014, %v1017
        %v1047 = vsel %vm938, %v1046, %v901
        %v1048 = vsel %vm940, %v1047, %v1021
        %v1049 = vsel %vm936, %v1024, %v1027
        %v1050 = vsel %vm938, %v1049, %v914
        %v1051 = vsel %vm940, %v1050, %v1031
        %v1052 = vsel %vm936, %v1034, %v1037
        %v1053 = vsel %vm938, %v1052, %v928
        %v1054 = vsel %vm940, %v1053, %v1041
        %1055 = vrot.lane.b32.xlu0 %v873, 32
        %v1056 = vpop.permute.xlu0 %1055
        %1058 = vrot.lane.b32.xlu0 %v883, 64
        %v1059 = vpop.permute.xlu0 %1058
        %1061 = vrot.lane.b32.xlu0 %v887, 96
        %v1062 = vpop.permute.xlu0 %1061
        %1065 = vrot.lane.b32.xlu0 %v895, 32
        %v1066 = vpop.permute.xlu0 %1065
        %1068 = vrot.lane.b32.xlu0 %v897, 64
        %v1069 = vpop.permute.xlu0 %1068
        %1071 = vrot.lane.b32.xlu0 %v901, 96
        %v1072 = vpop.permute.xlu0 %1071
        %1075 = vrot.lane.b32.xlu0 %v879, 32
        %v1076 = vpop.permute.xlu0 %1075
        %1078 = vrot.lane.b32.xlu0 %v910, 64
        %v1079 = vpop.permute.xlu0 %1078
        %1081 = vrot.lane.b32.xlu0 %v914, 96
        %v1082 = vpop.permute.xlu0 %1081
        %1085 = vrot.lane.b32.xlu0 %v922, 32
        %v1086 = vpop.permute.xlu0 %1085
        %1088 = vrot.lane.b32.xlu0 %v924, 64
        %v1089 = vpop.permute.xlu0 %1088
        %1091 = vrot.lane.b32.xlu0 %v928, 96
        %v1092 = vpop.permute.xlu0 %1091
        %v1095 = vsel %vm936, %v1056, %v1059
        %v1096 = vsel %vm938, %v1095, %v1062
        %v1097 = vsel %vm940, %v1096, %v891
        %v1098 = vsel %vm936, %v1066, %v1069
        %v1099 = vsel %vm938, %v1098, %v1072
        %v1100 = vsel %vm940, %v1099, %v905
        %v1101 = vsel %vm936, %v1076, %v1079
        %v1102 = vsel %vm938, %v1101, %v1082
        %v1103 = vsel %vm940, %v1102, %v918
        %v1104 = vsel %vm936, %v1086, %v1089
        %v1105 = vsel %vm938, %v1104, %v1092
        %v1106 = vsel %vm940, %v1105, %v932
        %v1107 = vlaneseq
        %v1108 = vshrl.u32 %v1107, 7
        %v1109 = vsub.s32 0, %v1108
        %v1110 = vrot.slane %v941, %v1109
        %v1111 = vlaneseq
        %v1112 = vshrl.u32 %v1111, 7
        %v1113 = vsub.s32 0, %v1112
        %v1114 = vrot.slane %v944, %v1113
        %v1115 = vlaneseq
        %v1116 = vshrl.u32 %v1115, 7
        %v1117 = vsub.s32 0, %v1116
        %v1118 = vrot.slane %v947, %v1117
        %v1119 = vlaneseq
        %v1120 = vshrl.u32 %v1119, 7
        %v1121 = vsub.s32 0, %v1120
        %v1122 = vrot.slane %v950, %v1121
        %v1123 = vlaneseq
        %v1124 = vshrl.u32 %v1123, 7
        %v1125 = vsub.s32 0, %v1124
        %v1126 = vrot.slane %v993, %v1125
        %v1127 = vlaneseq
        %v1128 = vshrl.u32 %v1127, 7
        %v1129 = vsub.s32 0, %v1128
        %v1130 = vrot.slane %v996, %v1129
        %v1131 = vlaneseq
        %v1132 = vshrl.u32 %v1131, 7
        %v1133 = vsub.s32 0, %v1132
        %v1134 = vrot.slane %v999, %v1133
        %v1135 = vlaneseq
        %v1136 = vshrl.u32 %v1135, 7
        %v1137 = vsub.s32 0, %v1136
        %v1138 = vrot.slane %v1002, %v1137
        %v1139 = vlaneseq
        %v1140 = vshrl.u32 %v1139, 7
        %v1141 = vsub.s32 0, %v1140
        %v1142 = vrot.slane %v1045, %v1141
        %v1143 = vlaneseq
        %v1144 = vshrl.u32 %v1143, 7
        %v1145 = vsub.s32 0, %v1144
        %v1146 = vrot.slane %v1048, %v1145
        %v1147 = vlaneseq
        %v1148 = vshrl.u32 %v1147, 7
        %v1149 = vsub.s32 0, %v1148
        %v1150 = vrot.slane %v1051, %v1149
        %v1151 = vlaneseq
        %v1152 = vshrl.u32 %v1151, 7
        %v1153 = vsub.s32 0, %v1152
        %v1154 = vrot.slane %v1054, %v1153
        %v1155 = vlaneseq
        %v1156 = vshrl.u32 %v1155, 7
        %v1157 = vsub.s32 0, %v1156
        %v1158 = vrot.slane %v1097, %v1157
        %v1159 = vlaneseq
        %v1160 = vshrl.u32 %v1159, 7
        %v1161 = vsub.s32 0, %v1160
        %v1162 = vrot.slane %v1100, %v1161
        %v1163 = vlaneseq
        %v1164 = vshrl.u32 %v1163, 7
        %v1165 = vsub.s32 0, %v1164
        %v1166 = vrot.slane %v1103, %v1165
        %v1167 = vlaneseq
        %v1168 = vshrl.u32 %v1167, 7
        %v1169 = vsub.s32 0, %v1168
        %v1170 = vrot.slane %v1106, %v1169
        %v1187 = vcombine.low %v1110, %v1114
        %v1188 = vcombine.low %v1118, %v1122
        %v1189 = vcombine.low %v1126, %v1130
        %v1190 = vcombine.low %v1134, %v1138
        %v1191 = vcombine.low %v1142, %v1146
        %v1192 = vcombine.low %v1150, %v1154
        %v1193 = vcombine.low %v1158, %v1162
        %v1194 = vcombine.low %v1166, %v1170
        %1203 = vst [vmem:[%s179] sm:$0x77] %v1187
        %1204 = vst [vmem:[%s179 + $0x8] sm:$0x77] %v1188
        %1205 = vst [vmem:[%s179 + $0x10] sm:$0x77] %v1189
        %1206 = vst [vmem:[%s179 + $0x18] sm:$0x77] %v1190
        %1207 = vst [vmem:[%s179 + $0x20] sm:$0x77] %v1191
        %1208 = vst [vmem:[%s179 + $0x28] sm:$0x77] %v1192
        %1209 = vst [vmem:[%s179 + $0x30] sm:$0x77] %v1193
        %1210 = vst [vmem:[%s179 + $0x38] sm:$0x77] %v1194
        %p1211 = scmp.lt.s32.totalorder %s17, 1
        %s1212 = scalar_select %p1211, %s17, 1
        %s1213 = smul.addr %s1212, 16
        %s1214 = smul.addr %s1213, 4
        %s1215 = scalar_lea.vmem %s2, %s1214
        // Predicated region
        $region37: #{tpu_custom_call.1} parent=27 // pred_check
          %p1216 = pneg %p82
        $region38: #{tpu_custom_call.1} parent=27 // pred_check_branch
          %1218 = sbr.rel (%p1216) target = $region40
        $region39: #{tpu_custom_call.1} parent=27 // pred_region
          _
        $region40: #{tpu_custom_call.1} parent=27 // pred_fallthru
          _
      $region28: #{tpu_custom_call.1} parent=5 // pred_fallthru
        _
      %p1219 = scmp.le.s32.totalorder 2, %s12
      // Predicated region
      $region41: #{tpu_custom_call.1} parent=5 // pred_check
        %p1220 = pneg %p1219
      $region42: #{tpu_custom_call.1} parent=5 // pred_check_branch
        %1222 = sbr.rel (%p1220) target = $region44
      $region43: #{tpu_custom_call.1} parent=5 // pred_region
        %s1223 = ssub.s32 %s12, 2
        // Predicated region
        $region45: #{tpu_custom_call.1} parent=43 // pred_check
          %p1224 = pneg %p88
        $region46: #{tpu_custom_call.1} parent=43 // pred_check_branch
          %1226 = sbr.rel (%p1224) target = $region48
        $region47: #{tpu_custom_call.1} parent=43 // pred_region
          %p1227 = scmp.lt.s32.totalorder %s18, 1
          %s1228 = scalar_select %p1227, %s18, 1
          %s1229 = smul.addr %s1228, 16
          %s1230 = smul.addr %s1229, 4
          %s1231 = scalar_lea.vmem %s2, %s1230
        $region48: #{tpu_custom_call.1} parent=43 // pred_fallthru
          _
      $region44: #{tpu_custom_call.1} parent=5 // pred_fallthru
        _
    $region6: #{tpu_custom_call.1} parent=1 // loop_footer
      %s16 = sadd.s32 1, %s12
    $region7: #{tpu_custom_call.1} parent=1 // loop_footer_branch
      %11 = sbr.rel target = $region3
    $region8: #{tpu_custom_call.1} parent=1 // loop_exit
      _
    %1232 = vsyncpa [#allocation3], 1
    %s1233 = scalar_lea.sflag [#allocation3], 1
    %1234 = vsyncpa %s1233, 1
    %1235 = vsyncpa [#allocation5], 1

</llo_original>
